<compile_context>
chip_gen: v7x
topology: tpu7x:2x2x1
jax: 0.10.0
libtpu: 0.0.40
codegen_flags: <defaults>
</compile_context>

<pallas_src>
import numpy as np
import jax
import jax.numpy as jnp
from jax.experimental import pallas as pl
from jax.experimental.pallas import tpu as pltpu

BN_EPS = 1e-5
F_PAD = 128  # lane-padded feature width for every stage


def _make_kernel(beta, De, Dc, L, b_true):
    inv_n = 1.0 / float(b_true)

    def kernel(x_ref, w_ref, b_ref, act_ref, loss_ref):
        x = x_ref[0]      # (Bp, 128) f32: ecg | clinical | zeros
        eps = x_ref[1]    # (Bp, 128) f32: eps in lanes [0:L), zeros elsewhere
        Bp = x.shape[0]

        # Row mask for padded batch rows (keeps BN stats / losses exact).
        rowmask = (jax.lax.broadcasted_iota(jnp.int32, (Bp, F_PAD), 0)
                   < b_true).astype(jnp.float32)

        def brow(i):      # (1, 128) f32 bias / BN-parameter row
            return b_ref[i:i + 1, :]

        def dot_bf16(a, wi):
            # bf16 MXU operands, f32 accumulation. Weights are already bf16.
            return jnp.dot(a.astype(jnp.bfloat16), w_ref[wi],
                           preferred_element_type=jnp.float32)

        def bn(v, g, b):
            # nn.BatchNorm1d training forward over the TRUE batch rows only.
            vm = v * rowmask
            mean = jnp.sum(vm, axis=0, keepdims=True) * inv_n
            d = (v - mean) * rowmask
            var = jnp.sum(d * d, axis=0, keepdims=True) * inv_n   # biased var
            return (v - mean) * jax.lax.rsqrt(var + BN_EPS) * g + b

        # --- fused encoders: [Linear -> ReLU -> BatchNorm1d] x 2 (block-diag W)
        h = bn(jnp.maximum(dot_bf16(x, 0) + brow(0), 0.0), brow(1), brow(2))
        h = bn(jnp.maximum(dot_bf16(h, 1) + brow(3), 0.0), brow(4), brow(5))

        # --- fused mu / log_var heads for BOTH encoders in one matmul.
        # Column layout: lanes [0:L) = ecg_mu+clin_mu, [L:2L) = ecg_lv+clin_lv.
        head = dot_bf16(h, 2) + brow(6)
        mulv = 0.5 * head                       # group fusion: (a + b) / 2

        lane = jax.lax.broadcasted_iota(jnp.int32, mulv.shape, 1)
        lat = lane < L
        mu = jnp.where(lat, mulv, 0.0)                                     # [0:L)
        lv = jnp.where(lat, pltpu.roll(mulv, shift=F_PAD - L, axis=1), 0.0)  # [0:L)

        # --- reparameterize (eps is zero outside latent lanes / padded rows)
        z = mu + eps * jnp.exp(0.5 * lv)        # (Bp, 128), z in lanes [0:L)

        # --- fused decoders: Linear -> ReLU -> Linear
        hd = jnp.maximum(dot_bf16(z, 3) + brow(7), 0.0)
        recon = dot_bf16(hd, 4) + brow(8)
        # recon: lanes [0:De) = ecg_recon, [De:De+Dc) = clinical_recon, rest 0

        # --- pack z | ecg_recon | clinical_recon into one lane-dense slab
        act_ref[...] = z + pltpu.roll(recon, shift=L, axis=1)

        # --- losses: sublane (axis-0) reduce first, then cross-lane sums only
        # on (1,128) rows. Padded lanes of kl_term and diff2 are exactly 0.
        kl_row = jnp.sum((1.0 + lv - mu * mu - jnp.exp(lv)) * rowmask,
                         axis=0, keepdims=True)                         # (1,128)
        diff = recon - x
        d2_row = jnp.sum(diff * diff * rowmask, axis=0, keepdims=True)  # (1,128)

        lane_r = jax.lax.broadcasted_iota(jnp.int32, (1, F_PAD), 1)
        kl = -0.5 * jnp.sum(kl_row, axis=1, keepdims=True)              # (1,1)
        se_ecg = jnp.sum(jnp.where(lane_r < De, d2_row, 0.0),
                         axis=1, keepdims=True)
        se_all = jnp.sum(d2_row, axis=1, keepdims=True)
        rec = (se_ecg * (1.0 / float(b_true * De))
               + (se_all - se_ecg) * (1.0 / float(b_true * Dc)))
        tot = rec + beta * kl                   # attributes=None -> attr_loss == 0

        loss_ref[...] = (jnp.where(lane_r == 0, kl, 0.0)
                         + jnp.where(lane_r == 1, rec, 0.0)
                         + jnp.where(lane_r == 2, tot, 0.0))

    return kernel


def interpretable_ecg_vae_forward(ecg, clinical, eps, w_slab, b_slab, dims,
                                  beta=1.0, gamma=0.1):
    """Pallas-backed InterpretableECGVAE.forward(ecg, clinical)."""
    De, Dc, L = dims
    B = ecg.shape[0]
    assert De + Dc <= F_PAD and 2 * L <= F_PAD and L + De + Dc <= F_PAD
    Bp = max(8, ((B + 7) // 8) * 8)   # sublane-align batch; rows >= B are masked
    assert Bp <= 4096  # TODO(synk): gridded multi-pass variant for huge batches

    # Layout plumbing only: pack inputs into one lane-padded slab.
    x_slab = jnp.zeros((2, Bp, F_PAD), jnp.float32)
    x_slab = x_slab.at[0, :B, :De].set(ecg)
    x_slab = x_slab.at[0, :B, De:De + Dc].set(clinical)
    x_slab = x_slab.at[1, :B, :L].set(eps)

    cost = pl.CostEstimate(
        flops=2 * 5 * Bp * F_PAD * F_PAD,
        transcendentals=2 * Bp * F_PAD,
        bytes_accessed=(x_slab.size * 4 + w_slab.size * 2 + b_slab.size * 4
                        + Bp * F_PAD * 4 + F_PAD * 4))

    vmem = pl.BlockSpec(memory_space=pltpu.MemorySpace.VMEM)
    act, losses = pl.pallas_call(
        _make_kernel(float(beta), De, Dc, L, B),
        out_shape=(jax.ShapeDtypeStruct((Bp, F_PAD), jnp.float32),
                   jax.ShapeDtypeStruct((1, F_PAD), jnp.float32)),
        in_specs=[vmem, vmem, vmem],
        out_specs=(vmem, vmem),
        compiler_params=pltpu.CompilerParams(vmem_limit_bytes=32 * 1024 * 1024),
        cost_estimate=cost,
    )(x_slab, w_slab, b_slab)

    z = act[:B, :L]
    ecg_recon = act[:B, L:L + De]
    clin_recon = act[:B, L + De:L + De + Dc]
    # TODO(synk): attribute_dims=None -> attribute_predictors is empty, so
    # attr_loss is identically 0 (gamma unused).
    return {
        "total_loss": losses[0, 2],
        "recon_loss": losses[0, 1],
        "kl_loss": losses[0, 0],
        "attr_loss": jnp.zeros((), jnp.float32),
        "ecg_recon": ecg_recon,
        "clinical_recon": clin_recon,
        "z": z,
    }


# ---------------------------------------------------------------------------
# Parameter construction: natural per-layer params (PyTorch-equivalent shapes,
# stored as (in, out) so y = x @ W + b) and packing into the fused slabs.
# ---------------------------------------------------------------------------

def _linear(key, d_in, d_out):
    kw, kb = jax.random.split(key)
    bound = d_in ** -0.5
    w = jax.random.uniform(kw, (d_in, d_out), jnp.float32, -bound, bound)
    b = jax.random.uniform(kb, (d_out,), jnp.float32, -bound, bound)
    return w, b


def init_raw_params(key, De, Dc, L, ecg_hidden, clin_hidden):
    assert len(ecg_hidden) == 2 and len(clin_hidden) == 2
    H1e, H2e = ecg_hidden
    H1c, H2c = clin_hidden
    ks = iter(jax.random.split(key, 16))
    p = {}
    # ECG encoder
    p["eW1"], p["eb1"] = _linear(next(ks), De, H1e)
    p["eg1"], p["ebt1"] = jnp.ones((H1e,), jnp.float32), jnp.zeros((H1e,), jnp.float32)
    p["eW2"], p["eb2"] = _linear(next(ks), H1e, H2e)
    p["eg2"], p["ebt2"] = jnp.ones((H2e,), jnp.float32), jnp.zeros((H2e,), jnp.float32)
    p["eWmu"], p["ebmu"] = _linear(next(ks), H2e, L)
    p["eWv"], p["ebv"] = _linear(next(ks), H2e, L)
    # Clinical encoder
    p["cW1"], p["cb1"] = _linear(next(ks), Dc, H1c)
    p["cg1"], p["cbt1"] = jnp.ones((H1c,), jnp.float32), jnp.zeros((H1c,), jnp.float32)
    p["cW2"], p["cb2"] = _linear(next(ks), H1c, H2c)
    p["cg2"], p["cbt2"] = jnp.ones((H2c,), jnp.float32), jnp.zeros((H2c,), jnp.float32)
    p["cWmu"], p["cbmu"] = _linear(next(ks), H2c, L)
    p["cWv"], p["cbv"] = _linear(next(ks), H2c, L)
    # Decoders
    p["edW1"], p["edb1"] = _linear(next(ks), L, H2e)
    p["edW2"], p["edb2"] = _linear(next(ks), H2e, De)
    p["cdW1"], p["cdb1"] = _linear(next(ks), L, H2c)
    p["cdW2"], p["cdb2"] = _linear(next(ks), H2c, Dc)
    return p


def pack_params(p, De, Dc, L, ecg_hidden, clin_hidden):
    H1e, H2e = ecg_hidden
    H1c, H2c = clin_hidden
    assert De + Dc <= F_PAD and H1e + H1c <= F_PAD and H2e + H2c <= F_PAD
    assert 2 * L <= F_PAD

    W = jnp.zeros((5, F_PAD, F_PAD), jnp.float32)
    # stage 0: encoder layer 1 (block-diagonal over the two branches)
    W = W.at[0, :De, :H1e].set(p["eW1"])
    W = W.at[0, De:De + Dc, H1e:H1e + H1c].set(p["cW1"])
    # stage 1: encoder layer 2
    W = W.at[1, :H1e, :H2e].set(p["eW2"])
    W = W.at[1, H1e:H1e + H1c, H2e:H2e + H2c].set(p["cW2"])
    # stage 2: fused mu|log_var heads (ecg & clinical rows sum into same lanes)
    W = W.at[2, :H2e, :L].set(p["eWmu"])
    W = W.at[2, :H2e, L:2 * L].set(p["eWv"])
    W = W.at[2, H2e:H2e + H2c, :L].set(p["cWmu"])
    W = W.at[2, H2e:H2e + H2c, L:2 * L].set(p["cWv"])
    # stage 3: decoder layer 1 (shared z input -> concatenated outputs)
    W = W.at[3, :L, :H2e].set(p["edW1"])
    W = W.at[3, :L, H2e:H2e + H2c].set(p["cdW1"])
    # stage 4: decoder layer 2 (block diagonal)
    W = W.at[4, :H2e, :De].set(p["edW2"])
    W = W.at[4, H2e:H2e + H2c, De:De + Dc].set(p["cdW2"])

    Bv = jnp.zeros((9, F_PAD), jnp.float32)
    Bv = Bv.at[0, :H1e].set(p["eb1"]).at[0, H1e:H1e + H1c].set(p["cb1"])
    Bv = Bv.at[1, :H1e].set(p["eg1"]).at[1, H1e:H1e + H1c].set(p["cg1"])
    Bv = Bv.at[2, :H1e].set(p["ebt1"]).at[2, H1e:H1e + H1c].set(p["cbt1"])
    Bv = Bv.at[3, :H2e].set(p["eb2"]).at[3, H2e:H2e + H2c].set(p["cb2"])
    Bv = Bv.at[4, :H2e].set(p["eg2"]).at[4, H2e:H2e + H2c].set(p["cg2"])
    Bv = Bv.at[5, :H2e].set(p["ebt2"]).at[5, H2e:H2e + H2c].set(p["cbt2"])
    Bv = Bv.at[6, :L].set(p["ebmu"] + p["cbmu"]).at[6, L:2 * L].set(p["ebv"] + p["cbv"])
    Bv = Bv.at[7, :H2e].set(p["edb1"]).at[7, H2e:H2e + H2c].set(p["cdb1"])
    Bv = Bv.at[8, :De].set(p["edb2"]).at[8, De:De + Dc].set(p["cdb2"])
    # bf16 weight slab for the MXU; biases / BN params stay f32.
    return W.astype(jnp.bfloat16), Bv


# ---------------------------------------------------------------------------
# Pure-JAX reference mirroring the PyTorch module structure (and the kernel's
# bf16 matmul operands) for numerical verification.
# ---------------------------------------------------------------------------

def _ref_linear(x, w, b):
    return jnp.dot(x.astype(jnp.bfloat16), w.astype(jnp.bfloat16),
                   preferred_element_type=jnp.float32) + b


def _ref_bn(x, g, b):
    mean = jnp.mean(x, axis=0, keepdims=True)
    var = jnp.mean((x - mean) ** 2, axis=0, keepdims=True)
    return (x - mean) * jax.lax.rsqrt(var + BN_EPS) * g + b


def reference_forward(ecg, clinical, eps, p, beta):
    he = _ref_bn(jnp.maximum(_ref_linear(ecg, p["eW1"], p["eb1"]), 0.0),
                 p["eg1"], p["ebt1"])
    he = _ref_bn(jnp.maximum(_ref_linear(he, p["eW2"], p["eb2"]), 0.0),
                 p["eg2"], p["ebt2"])
    hc = _ref_bn(jnp.maximum(_ref_linear(clinical, p["cW1"], p["cb1"]), 0.0),
                 p["cg1"], p["cbt1"])
    hc = _ref_bn(jnp.maximum(_ref_linear(hc, p["cW2"], p["cb2"]), 0.0),
                 p["cg2"], p["cbt2"])
    mu = (_ref_linear(he, p["eWmu"], p["ebmu"])
          + _ref_linear(hc, p["cWmu"], p["cbmu"])) / 2.0
    lv = (_ref_linear(he, p["eWv"], p["ebv"])
          + _ref_linear(hc, p["cWv"], p["cbv"])) / 2.0
    z = mu + eps * jnp.exp(0.5 * lv)
    hde = jnp.maximum(_ref_linear(z, p["edW1"], p["edb1"]), 0.0)
    ecg_recon = _ref_linear(hde, p["edW2"], p["edb2"])
    hdc = jnp.maximum(_ref_linear(z, p["cdW1"], p["cdb1"]), 0.0)
    clin_recon = _ref_linear(hdc, p["cdW2"], p["cdb2"])
    kl = -0.5 * jnp.sum(1.0 + lv - mu ** 2 - jnp.exp(lv))
    rec = jnp.mean((ecg_recon - ecg) ** 2) + jnp.mean((clin_recon - clinical) ** 2)
    tot = rec + beta * kl
    return {"total_loss": tot, "recon_loss": rec, "kl_loss": kl,
            "ecg_recon": ecg_recon, "clinical_recon": clin_recon, "z": z}


if __name__ == "__main__":
    B = 12                      # deliberately NOT a multiple of 8 (mask path)
    ECG_DIM, CLIN_DIM, LATENT = 32, 16, 8
    ECG_HIDDEN = [32, 16]
    CLIN_HIDDEN = [16, 8]
    BETA = 1.0

    root = jax.random.PRNGKey(0)
    k_ecg, k_clin, k_eps, k_par = jax.random.split(root, 4)

    ecg = jax.random.normal(k_ecg, (B, ECG_DIM), jnp.float32)
    clinical = jax.random.normal(k_clin, (B, CLIN_DIM), jnp.float32)
    eps = jax.random.normal(k_eps, (B, LATENT), jnp.float32)  # randn_like(std)

    raw = init_raw_params(k_par, ECG_DIM, CLIN_DIM, LATENT, ECG_HIDDEN, CLIN_HIDDEN)
    w_slab, b_slab = pack_params(raw, ECG_DIM, CLIN_DIM, LATENT,
                                 ECG_HIDDEN, CLIN_HIDDEN)

    # TODO(synk): nn.BatchNorm1d running_mean/running_var buffer updates are
    # stateful side effects of the PyTorch module and are not reproduced here.
    out = interpretable_ecg_vae_forward(ecg, clinical, eps, w_slab, b_slab,
                                        (ECG_DIM, CLIN_DIM, LATENT),
                                        beta=BETA, gamma=0.1)
    jax.block_until_ready(out)

    ref = reference_forward(ecg, clinical, eps, raw, BETA)
    jax.block_until_ready(ref)

    for name in ("z", "ecg_recon", "clinical_recon",
                 "kl_loss", "recon_loss", "total_loss"):
        np.testing.assert_allclose(np.asarray(out[name]), np.asarray(ref[name]),
                                   rtol=2e-2, atol=2e-3, err_msg=name)

    print("KERNEL_OK")
</pallas_src>

<mosaic_0001>
module attributes {stable_mosaic.version = 11 : i64} {
  func.func @kernel(%arg0: memref<2x16x128xf32, #tpu.memory_space<vmem>>, %arg1: memref<5x128x128xbf16, #tpu.memory_space<vmem>>, %arg2: memref<9x128xf32, #tpu.memory_space<vmem>>, %arg3: memref<16x128xf32, #tpu.memory_space<vmem>>, %arg4: memref<1x128xf32, #tpu.memory_space<vmem>>) attributes {dimension_semantics = [], scalar_prefetch = 0 : i64, scratch_operands = 0 : i64, tpu.core_type = #tpu.core_type<tc>} {
    %c0 = arith.constant 0 : index
    %c0_0 = arith.constant 0 : index
    %c0_1 = arith.constant 0 : index
    %0 = vector.load %arg0[%c0, %c0_0, %c0_1] : memref<2x16x128xf32, #tpu.memory_space<vmem>>, vector<1x16x128xf32>
    %1 = vector.shape_cast %0 : vector<1x16x128xf32> to vector<16x128xf32>
    %c1 = arith.constant 1 : index
    %c0_2 = arith.constant 0 : index
    %c0_3 = arith.constant 0 : index
    %2 = vector.load %arg0[%c1, %c0_2, %c0_3] : memref<2x16x128xf32, #tpu.memory_space<vmem>>, vector<1x16x128xf32>
    %3 = vector.shape_cast %2 : vector<1x16x128xf32> to vector<16x128xf32>
    %4 = tpu.iota {dimensions = array<i32: 0>} : vector<16x128xi32>
    %c12_i32 = arith.constant 12 : i32
    %5 = vector.broadcast %c12_i32 : i32 to vector<16x128xi32>
    %6 = arith.cmpi slt, %4, %5 : vector<16x128xi32>
    %7 = arith.extui %6 : vector<16x128xi1> to vector<16x128xi32>
    %8 = arith.sitofp %7 : vector<16x128xi32> to vector<16x128xf32>
    %9 = arith.truncf %1 : vector<16x128xf32> to vector<16x128xbf16>
    %c0_4 = arith.constant 0 : index
    %c0_5 = arith.constant 0 : index
    %c0_6 = arith.constant 0 : index
    %10 = vector.load %arg1[%c0_4, %c0_5, %c0_6] : memref<5x128x128xbf16, #tpu.memory_space<vmem>>, vector<1x128x128xbf16>
    %11 = vector.shape_cast %10 : vector<1x128x128xbf16> to vector<128x128xbf16>
    %cst = arith.constant dense<0.000000e+00> : vector<16x128xf32>
    %12 = tpu.matmul %9, %11, %cst {dimension_numbers = #tpu.dot_dimension_numbers<[1], [0], [0], [1], [0, 0, 1, 1], [], []>} : vector<16x128xbf16>, vector<128x128xbf16>, vector<16x128xf32> -> vector<16x128xf32>
    %c0_7 = arith.constant 0 : index
    %c0_8 = arith.constant 0 : index
    %13 = vector.load %arg2[%c0_7, %c0_8] : memref<9x128xf32, #tpu.memory_space<vmem>>, vector<1x128xf32>
    %14 = vector.broadcast %13 : vector<1x128xf32> to vector<16x128xf32>
    %15 = arith.addf %12, %14 : vector<16x128xf32>
    %cst_9 = arith.constant 0.000000e+00 : f32
    %16 = vector.broadcast %cst_9 : f32 to vector<16x128xf32>
    %17 = arith.maximumf %15, %16 : vector<16x128xf32>
    %c1_10 = arith.constant 1 : index
    %c0_11 = arith.constant 0 : index
    %18 = vector.load %arg2[%c1_10, %c0_11] : memref<9x128xf32, #tpu.memory_space<vmem>>, vector<1x128xf32>
    %c2 = arith.constant 2 : index
    %c0_12 = arith.constant 0 : index
    %19 = vector.load %arg2[%c2, %c0_12] : memref<9x128xf32, #tpu.memory_space<vmem>>, vector<1x128xf32>
    %20 = arith.mulf %17, %8 : vector<16x128xf32>
    %cst_13 = arith.constant dense<0.000000e+00> : vector<128xf32>
    %21 = vector.multi_reduction <add>, %20, %cst_13 [0] : vector<16x128xf32> to vector<128xf32>
    %22 = vector.shape_cast %21 : vector<128xf32> to vector<1x128xf32>
    %cst_14 = arith.constant 0.0833333358 : f32
    %23 = vector.broadcast %cst_14 : f32 to vector<1x128xf32>
    %24 = arith.mulf %22, %23 : vector<1x128xf32>
    %25 = vector.broadcast %24 : vector<1x128xf32> to vector<16x128xf32>
    %26 = arith.subf %17, %25 : vector<16x128xf32>
    %27 = arith.mulf %26, %8 : vector<16x128xf32>
    %28 = arith.mulf %27, %27 : vector<16x128xf32>
    %cst_15 = arith.constant dense<0.000000e+00> : vector<128xf32>
    %29 = vector.multi_reduction <add>, %28, %cst_15 [0] : vector<16x128xf32> to vector<128xf32>
    %30 = vector.shape_cast %29 : vector<128xf32> to vector<1x128xf32>
    %cst_16 = arith.constant 0.0833333358 : f32
    %31 = vector.broadcast %cst_16 : f32 to vector<1x128xf32>
    %32 = arith.mulf %30, %31 : vector<1x128xf32>
    %33 = vector.broadcast %24 : vector<1x128xf32> to vector<16x128xf32>
    %34 = arith.subf %17, %33 : vector<16x128xf32>
    %cst_17 = arith.constant 9.99999974E-6 : f32
    %35 = vector.broadcast %cst_17 : f32 to vector<1x128xf32>
    %36 = arith.addf %32, %35 : vector<1x128xf32>
    %37 = math.rsqrt %36 : vector<1x128xf32>
    %38 = vector.broadcast %37 : vector<1x128xf32> to vector<16x128xf32>
    %39 = arith.mulf %34, %38 : vector<16x128xf32>
    %40 = vector.broadcast %18 : vector<1x128xf32> to vector<16x128xf32>
    %41 = arith.mulf %39, %40 : vector<16x128xf32>
    %42 = vector.broadcast %19 : vector<1x128xf32> to vector<16x128xf32>
    %43 = arith.addf %41, %42 : vector<16x128xf32>
    %44 = arith.truncf %43 : vector<16x128xf32> to vector<16x128xbf16>
    %c1_18 = arith.constant 1 : index
    %c0_19 = arith.constant 0 : index
    %c0_20 = arith.constant 0 : index
    %45 = vector.load %arg1[%c1_18, %c0_19, %c0_20] : memref<5x128x128xbf16, #tpu.memory_space<vmem>>, vector<1x128x128xbf16>
    %46 = vector.shape_cast %45 : vector<1x128x128xbf16> to vector<128x128xbf16>
    %cst_21 = arith.constant dense<0.000000e+00> : vector<16x128xf32>
    %47 = tpu.matmul %44, %46, %cst_21 {dimension_numbers = #tpu.dot_dimension_numbers<[1], [0], [0], [1], [0, 0, 1, 1], [], []>} : vector<16x128xbf16>, vector<128x128xbf16>, vector<16x128xf32> -> vector<16x128xf32>
    %c3 = arith.constant 3 : index
    %c0_22 = arith.constant 0 : index
    %48 = vector.load %arg2[%c3, %c0_22] : memref<9x128xf32, #tpu.memory_space<vmem>>, vector<1x128xf32>
    %49 = vector.broadcast %48 : vector<1x128xf32> to vector<16x128xf32>
    %50 = arith.addf %47, %49 : vector<16x128xf32>
    %cst_23 = arith.constant 0.000000e+00 : f32
    %51 = vector.broadcast %cst_23 : f32 to vector<16x128xf32>
    %52 = arith.maximumf %50, %51 : vector<16x128xf32>
    %c4 = arith.constant 4 : index
    %c0_24 = arith.constant 0 : index
    %53 = vector.load %arg2[%c4, %c0_24] : memref<9x128xf32, #tpu.memory_space<vmem>>, vector<1x128xf32>
    %c5 = arith.constant 5 : index
    %c0_25 = arith.constant 0 : index
    %54 = vector.load %arg2[%c5, %c0_25] : memref<9x128xf32, #tpu.memory_space<vmem>>, vector<1x128xf32>
    %55 = arith.mulf %52, %8 : vector<16x128xf32>
    %cst_26 = arith.constant dense<0.000000e+00> : vector<128xf32>
    %56 = vector.multi_reduction <add>, %55, %cst_26 [0] : vector<16x128xf32> to vector<128xf32>
    %57 = vector.shape_cast %56 : vector<128xf32> to vector<1x128xf32>
    %cst_27 = arith.constant 0.0833333358 : f32
    %58 = vector.broadcast %cst_27 : f32 to vector<1x128xf32>
    %59 = arith.mulf %57, %58 : vector<1x128xf32>
    %60 = vector.broadcast %59 : vector<1x128xf32> to vector<16x128xf32>
    %61 = arith.subf %52, %60 : vector<16x128xf32>
    %62 = arith.mulf %61, %8 : vector<16x128xf32>
    %63 = arith.mulf %62, %62 : vector<16x128xf32>
    %cst_28 = arith.constant dense<0.000000e+00> : vector<128xf32>
    %64 = vector.multi_reduction <add>, %63, %cst_28 [0] : vector<16x128xf32> to vector<128xf32>
    %65 = vector.shape_cast %64 : vector<128xf32> to vector<1x128xf32>
    %cst_29 = arith.constant 0.0833333358 : f32
    %66 = vector.broadcast %cst_29 : f32 to vector<1x128xf32>
    %67 = arith.mulf %65, %66 : vector<1x128xf32>
    %68 = vector.broadcast %59 : vector<1x128xf32> to vector<16x128xf32>
    %69 = arith.subf %52, %68 : vector<16x128xf32>
    %cst_30 = arith.constant 9.99999974E-6 : f32
    %70 = vector.broadcast %cst_30 : f32 to vector<1x128xf32>
    %71 = arith.addf %67, %70 : vector<1x128xf32>
    %72 = math.rsqrt %71 : vector<1x128xf32>
    %73 = vector.broadcast %72 : vector<1x128xf32> to vector<16x128xf32>
    %74 = arith.mulf %69, %73 : vector<16x128xf32>
    %75 = vector.broadcast %53 : vector<1x128xf32> to vector<16x128xf32>
    %76 = arith.mulf %74, %75 : vector<16x128xf32>
    %77 = vector.broadcast %54 : vector<1x128xf32> to vector<16x128xf32>
    %78 = arith.addf %76, %77 : vector<16x128xf32>
    %79 = arith.truncf %78 : vector<16x128xf32> to vector<16x128xbf16>
    %c2_31 = arith.constant 2 : index
    %c0_32 = arith.constant 0 : index
    %c0_33 = arith.constant 0 : index
    %80 = vector.load %arg1[%c2_31, %c0_32, %c0_33] : memref<5x128x128xbf16, #tpu.memory_space<vmem>>, vector<1x128x128xbf16>
    %81 = vector.shape_cast %80 : vector<1x128x128xbf16> to vector<128x128xbf16>
    %cst_34 = arith.constant dense<0.000000e+00> : vector<16x128xf32>
    %82 = tpu.matmul %79, %81, %cst_34 {dimension_numbers = #tpu.dot_dimension_numbers<[1], [0], [0], [1], [0, 0, 1, 1], [], []>} : vector<16x128xbf16>, vector<128x128xbf16>, vector<16x128xf32> -> vector<16x128xf32>
    %c6 = arith.constant 6 : index
    %c0_35 = arith.constant 0 : index
    %83 = vector.load %arg2[%c6, %c0_35] : memref<9x128xf32, #tpu.memory_space<vmem>>, vector<1x128xf32>
    %84 = vector.broadcast %83 : vector<1x128xf32> to vector<16x128xf32>
    %85 = arith.addf %82, %84 : vector<16x128xf32>
    %cst_36 = arith.constant 5.000000e-01 : f32
    %86 = vector.broadcast %cst_36 : f32 to vector<16x128xf32>
    %87 = arith.mulf %86, %85 : vector<16x128xf32>
    %88 = tpu.iota {dimensions = array<i32: 1>} : vector<16x128xi32>
    %c8_i32 = arith.constant 8 : i32
    %89 = vector.broadcast %c8_i32 : i32 to vector<16x128xi32>
    %90 = arith.cmpi slt, %88, %89 : vector<16x128xi32>
    %cst_37 = arith.constant 0.000000e+00 : f32
    %91 = vector.broadcast %cst_37 : f32 to vector<16x128xf32>
    %92 = arith.select %90, %87, %91 : vector<16x128xi1>, vector<16x128xf32>
    %c120_i32 = arith.constant 120 : i32
    %93 = tpu.dynamic_rotate %87 by %c120_i32 dim 1 : vector<16x128xf32>, i32 -> vector<16x128xf32>
    %cst_38 = arith.constant 0.000000e+00 : f32
    %94 = vector.broadcast %cst_38 : f32 to vector<16x128xf32>
    %95 = arith.select %90, %93, %94 : vector<16x128xi1>, vector<16x128xf32>
    %cst_39 = arith.constant 5.000000e-01 : f32
    %96 = vector.broadcast %cst_39 : f32 to vector<16x128xf32>
    %97 = arith.mulf %96, %95 : vector<16x128xf32>
    %98 = math.exp %97 : vector<16x128xf32>
    %99 = arith.mulf %3, %98 : vector<16x128xf32>
    %100 = arith.addf %92, %99 : vector<16x128xf32>
    %101 = arith.truncf %100 : vector<16x128xf32> to vector<16x128xbf16>
    %c3_40 = arith.constant 3 : index
    %c0_41 = arith.constant 0 : index
    %c0_42 = arith.constant 0 : index
    %102 = vector.load %arg1[%c3_40, %c0_41, %c0_42] : memref<5x128x128xbf16, #tpu.memory_space<vmem>>, vector<1x128x128xbf16>
    %103 = vector.shape_cast %102 : vector<1x128x128xbf16> to vector<128x128xbf16>
    %cst_43 = arith.constant dense<0.000000e+00> : vector<16x128xf32>
    %104 = tpu.matmul %101, %103, %cst_43 {dimension_numbers = #tpu.dot_dimension_numbers<[1], [0], [0], [1], [0, 0, 1, 1], [], []>} : vector<16x128xbf16>, vector<128x128xbf16>, vector<16x128xf32> -> vector<16x128xf32>
    %c7 = arith.constant 7 : index
    %c0_44 = arith.constant 0 : index
    %105 = vector.load %arg2[%c7, %c0_44] : memref<9x128xf32, #tpu.memory_space<vmem>>, vector<1x128xf32>
    %106 = vector.broadcast %105 : vector<1x128xf32> to vector<16x128xf32>
    %107 = arith.addf %104, %106 : vector<16x128xf32>
    %cst_45 = arith.constant 0.000000e+00 : f32
    %108 = vector.broadcast %cst_45 : f32 to vector<16x128xf32>
    %109 = arith.maximumf %107, %108 : vector<16x128xf32>
    %110 = arith.truncf %109 : vector<16x128xf32> to vector<16x128xbf16>
    %c4_46 = arith.constant 4 : index
    %c0_47 = arith.constant 0 : index
    %c0_48 = arith.constant 0 : index
    %111 = vector.load %arg1[%c4_46, %c0_47, %c0_48] : memref<5x128x128xbf16, #tpu.memory_space<vmem>>, vector<1x128x128xbf16>
    %112 = vector.shape_cast %111 : vector<1x128x128xbf16> to vector<128x128xbf16>
    %cst_49 = arith.constant dense<0.000000e+00> : vector<16x128xf32>
    %113 = tpu.matmul %110, %112, %cst_49 {dimension_numbers = #tpu.dot_dimension_numbers<[1], [0], [0], [1], [0, 0, 1, 1], [], []>} : vector<16x128xbf16>, vector<128x128xbf16>, vector<16x128xf32> -> vector<16x128xf32>
    %c8 = arith.constant 8 : index
    %c0_50 = arith.constant 0 : index
    %114 = vector.load %arg2[%c8, %c0_50] : memref<9x128xf32, #tpu.memory_space<vmem>>, vector<1x128xf32>
    %115 = vector.broadcast %114 : vector<1x128xf32> to vector<16x128xf32>
    %116 = arith.addf %113, %115 : vector<16x128xf32>
    %c8_i32_51 = arith.constant 8 : i32
    %117 = tpu.dynamic_rotate %116 by %c8_i32_51 dim 1 : vector<16x128xf32>, i32 -> vector<16x128xf32>
    %118 = arith.addf %100, %117 : vector<16x128xf32>
    %c0_52 = arith.constant 0 : index
    %c0_53 = arith.constant 0 : index
    %119 = vector.load %arg3[%c0_52, %c0_53] : memref<16x128xf32, #tpu.memory_space<vmem>>, vector<16x128xf32>
    tpu.vector_store %arg3[%c0_52, %c0_53], %118 {strides = array<i32>} : memref<16x128xf32, #tpu.memory_space<vmem>>, vector<16x128xf32>,
    %cst_54 = arith.constant 1.000000e+00 : f32
    %120 = vector.broadcast %cst_54 : f32 to vector<16x128xf32>
    %121 = arith.addf %120, %95 : vector<16x128xf32>
    %122 = arith.mulf %92, %92 : vector<16x128xf32>
    %123 = arith.subf %121, %122 : vector<16x128xf32>
    %124 = math.exp %95 : vector<16x128xf32>
    %125 = arith.subf %123, %124 : vector<16x128xf32>
    %126 = arith.mulf %125, %8 : vector<16x128xf32>
    %cst_55 = arith.constant dense<0.000000e+00> : vector<128xf32>
    %127 = vector.multi_reduction <add>, %126, %cst_55 [0] : vector<16x128xf32> to vector<128xf32>
    %128 = vector.shape_cast %127 : vector<128xf32> to vector<1x128xf32>
    %129 = arith.subf %116, %1 : vector<16x128xf32>
    %130 = arith.mulf %129, %129 : vector<16x128xf32>
    %131 = arith.mulf %130, %8 : vector<16x128xf32>
    %cst_56 = arith.constant dense<0.000000e+00> : vector<128xf32>
    %132 = vector.multi_reduction <add>, %131, %cst_56 [0] : vector<16x128xf32> to vector<128xf32>
    %133 = vector.shape_cast %132 : vector<128xf32> to vector<1x128xf32>
    %134 = tpu.iota {dimensions = array<i32: 1>} : vector<1x128xi32>
    %cst_57 = arith.constant dense<0.000000e+00> : vector<1xf32>
    %135 = vector.multi_reduction <add>, %128, %cst_57 [1] : vector<1x128xf32> to vector<1xf32>
    %136 = vector.shape_cast %135 : vector<1xf32> to vector<1x1xf32>
    %cst_58 = arith.constant -5.000000e-01 : f32
    %137 = vector.broadcast %cst_58 : f32 to vector<1x1xf32>
    %138 = arith.mulf %137, %136 : vector<1x1xf32>
    %c32_i32 = arith.constant 32 : i32
    %139 = vector.broadcast %c32_i32 : i32 to vector<1x128xi32>
    %140 = arith.cmpi slt, %134, %139 : vector<1x128xi32>
    %cst_59 = arith.constant 0.000000e+00 : f32
    %141 = vector.broadcast %cst_59 : f32 to vector<1x128xf32>
    %142 = arith.select %140, %133, %141 : vector<1x128xi1>, vector<1x128xf32>
    %cst_60 = arith.constant dense<0.000000e+00> : vector<1xf32>
    %143 = vector.multi_reduction <add>, %142, %cst_60 [1] : vector<1x128xf32> to vector<1xf32>
    %144 = vector.shape_cast %143 : vector<1xf32> to vector<1x1xf32>
    %cst_61 = arith.constant dense<0.000000e+00> : vector<1xf32>
    %145 = vector.multi_reduction <add>, %133, %cst_61 [1] : vector<1x128xf32> to vector<1xf32>
    %146 = vector.shape_cast %145 : vector<1xf32> to vector<1x1xf32>
    %cst_62 = arith.constant 0.00260416674 : f32
    %147 = vector.broadcast %cst_62 : f32 to vector<1x1xf32>
    %148 = arith.mulf %144, %147 : vector<1x1xf32>
    %149 = arith.subf %146, %144 : vector<1x1xf32>
    %cst_63 = arith.constant 0.00520833349 : f32
    %150 = vector.broadcast %cst_63 : f32 to vector<1x1xf32>
    %151 = arith.mulf %149, %150 : vector<1x1xf32>
    %152 = arith.addf %148, %151 : vector<1x1xf32>
    %cst_64 = arith.constant 1.000000e+00 : f32
    %153 = vector.broadcast %cst_64 : f32 to vector<1x1xf32>
    %154 = arith.mulf %153, %138 : vector<1x1xf32>
    %155 = arith.addf %152, %154 : vector<1x1xf32>
    %c0_i32 = arith.constant 0 : i32
    %156 = vector.broadcast %c0_i32 : i32 to vector<1x128xi32>
    %157 = arith.cmpi eq, %134, %156 : vector<1x128xi32>
    %cst_65 = arith.constant 0.000000e+00 : f32
    %158 = vector.shape_cast %138 : vector<1x1xf32> to vector<1x1xf32>
    %159 = vector.broadcast %158 : vector<1x1xf32> to vector<1x128xf32>
    %160 = vector.broadcast %cst_65 : f32 to vector<1x128xf32>
    %161 = arith.select %157, %159, %160 : vector<1x128xi1>, vector<1x128xf32>
    %c1_i32 = arith.constant 1 : i32
    %162 = vector.broadcast %c1_i32 : i32 to vector<1x128xi32>
    %163 = arith.cmpi eq, %134, %162 : vector<1x128xi32>
    %cst_66 = arith.constant 0.000000e+00 : f32
    %164 = vector.shape_cast %152 : vector<1x1xf32> to vector<1x1xf32>
    %165 = vector.broadcast %164 : vector<1x1xf32> to vector<1x128xf32>
    %166 = vector.broadcast %cst_66 : f32 to vector<1x128xf32>
    %167 = arith.select %163, %165, %166 : vector<1x128xi1>, vector<1x128xf32>
    %168 = arith.addf %161, %167 : vector<1x128xf32>
    %c2_i32 = arith.constant 2 : i32
    %169 = vector.broadcast %c2_i32 : i32 to vector<1x128xi32>
    %170 = arith.cmpi eq, %134, %169 : vector<1x128xi32>
    %cst_67 = arith.constant 0.000000e+00 : f32
    %171 = vector.shape_cast %155 : vector<1x1xf32> to vector<1x1xf32>
    %172 = vector.broadcast %171 : vector<1x1xf32> to vector<1x128xf32>
    %173 = vector.broadcast %cst_67 : f32 to vector<1x128xf32>
    %174 = arith.select %170, %172, %173 : vector<1x128xi1>, vector<1x128xf32>
    %175 = arith.addf %168, %174 : vector<1x128xf32>
    %c0_68 = arith.constant 0 : index
    %c0_69 = arith.constant 0 : index
    %176 = vector.load %arg4[%c0_68, %c0_69] : memref<1x128xf32, #tpu.memory_space<vmem>>, vector<1x128xf32>
    tpu.vector_store %arg4[%c0_68, %c0_69], %175 {strides = array<i32>} : memref<1x128xf32, #tpu.memory_space<vmem>>, vector<1x128xf32>,
    return
  }
}

</mosaic_0001>

<llo_original>
// kernel: tpu_custom_call.1
$region0: #{tpu_custom_call.1}
  #allocation0 [shape = 'u32[]', space=smem, size = 0x4, offset = 0x4, fixed_abs, tag = 'smem constant byte address 0x4 - core index']
  #allocation1 [shape = 'u32[144,128]{1,0:T(1,128)}', space=vmem, size = 0x12000, scoped, tag = 'internal scratch']
  %s0 = inlined_call_operand.hbm [shape: f32[2,16,128], index: 0, kind: input, shape index: {}]
  %s1 = inlined_call_operand.hbm [shape: bf16[5,128,128], index: 1, kind: input, shape index: {}]
  %s2 = inlined_call_operand.hbm [shape: f32[9,128], index: 2, kind: input, shape index: {}]
  %s3 = inlined_call_operand.hbm [shape: f32[16,128], index: 3, kind: output, shape index: {0}]
  %s4 = inlined_call_operand.hbm [shape: f32[1,128], index: 4, kind: output, shape index: {1}]
  %5 = xla_tuple %s3, %s4
  %s6 = sld [smem:[#allocation0]]
  $region42: #{tpu_custom_call.1} parent=0
    _
  %s8 = ssub.s32 1, %s6
  %s9 = scalar_select 0, %s8, %s6
  $region1: #{tpu_custom_call.1} parent=0
    #allocation2 [shape = 'u8[16384]{0}', space=vmem, size = 0x4000, scoped, tag = 'input window, operand 0, single buffered']
    #allocation3 [shape = 's32[1]{0}', space=sflag, size = 0x4, scoped, tag = 'scoped memory for tpu_custom_call.1']
    #allocation4 [shape = 's32[1]{0}', space=sflag, size = 0x4, scoped, tag = 'scoped memory for tpu_custom_call.1']
    #allocation5 [shape = 'u8[163840]{0}', space=vmem, size = 0x28000, scoped, tag = 'input window, operand 1, single buffered']
    #allocation6 [shape = 's32[1]{0}', space=sflag, size = 0x4, scoped, tag = 'scoped memory for tpu_custom_call.1']
    #allocation7 [shape = 'u8[8192]{0}', space=vmem, size = 0x2000, scoped, tag = 'input window, operand 2, single buffered']
    #allocation8 [shape = 'u8[8192]{0}', space=vmem, size = 0x2000, scoped, tag = 'output window, operand 0, single buffered']
    #allocation9 [shape = 'u8[512]{0}', space=vmem, size = 0x400, scoped, tag = 'output window, operand 1, single buffered']
    #allocation10 [shape = 's32[1]{0}', space=sflag, size = 0x4, scoped, tag = 'scoped memory for tpu_custom_call.1']
    %10 = vsyncpa [#allocation3], 0
    %11 = vsyncpa [#allocation6], 0
    %12 = vsyncpa [#allocation4], 0
    %13 = vsyncpa [#allocation10], 0
    // Predicated region
    $region2: #{tpu_custom_call.1} parent=1 // pred_check
      _
    $region3: #{tpu_custom_call.1} parent=1 // pred_check_branch
      %15 = sbr.rel (0) target = $region5
    $region4: #{tpu_custom_call.1} parent=1 // pred_region
      %s17 = ssub.s32 512, 512
      %18 = vsyncadd [#allocation3], %s17
      %s19 = sshll.u32 [#allocation2], 4
      %s20 = int_to_ptr.vmem [resolvable:$true] %s19
      %25 = dma.hbm_to_vmem [thread:$0]  %s0, 512, %s20, [#allocation3], 128, 128, 8
    $region5: #{tpu_custom_call.1} parent=1 // pred_fallthru
      _
    // Predicated region
    $region6: #{tpu_custom_call.1} parent=1 // pred_check
      _
    $region7: #{tpu_custom_call.1} parent=1 // pred_check_branch
      %27 = sbr.rel (0) target = $region9
    $region8: #{tpu_custom_call.1} parent=1 // pred_region
      %s29 = ssub.s32 5120, 5120
      %30 = vsyncadd [#allocation6], %s29
      %s31 = sshll.u32 [#allocation5], 4
      %s32 = int_to_ptr.vmem [resolvable:$true] %s31
      %37 = dma.hbm_to_vmem [thread:$0]  %s1, 5120, %s32, [#allocation6], 64, 64, 4
    $region9: #{tpu_custom_call.1} parent=1 // pred_fallthru
      _
    // Predicated region
    $region10: #{tpu_custom_call.1} parent=1 // pred_check
      _
    $region11: #{tpu_custom_call.1} parent=1 // pred_check_branch
      %39 = sbr.rel (0) target = $region13
    $region12: #{tpu_custom_call.1} parent=1 // pred_region
      %s41 = ssub.s32 256, 256
      %42 = vsyncadd [#allocation6], %s41
      %s43 = sshll.u32 [#allocation7], 4
      %s44 = int_to_ptr.vmem [resolvable:$true] %s43
      %49 = dma.hbm_to_vmem [thread:$0]  %s2, 256, %s44, [#allocation6], 128, 128, 8
    $region13: #{tpu_custom_call.1} parent=1 // pred_fallthru
      _
    // Predicated region
    $region14: #{tpu_custom_call.1} parent=1 // pred_check
      _
    $region15: #{tpu_custom_call.1} parent=1 // pred_check_branch
      %51 = sbr.rel (0) target = $region17
    $region16: #{tpu_custom_call.1} parent=1 // pred_region
      %52 = dma.done [#allocation3], 512
    $region17: #{tpu_custom_call.1} parent=1 // pred_fallthru
      _
    // Predicated region
    $region18: #{tpu_custom_call.1} parent=1 // pred_check
      _
    $region19: #{tpu_custom_call.1} parent=1 // pred_check_branch
      %54 = sbr.rel (0) target = $region21
    $region20: #{tpu_custom_call.1} parent=1 // pred_region
      %55 = dma.done [#allocation6], 5120
    $region21: #{tpu_custom_call.1} parent=1 // pred_fallthru
      _
    // Predicated region
    $region22: #{tpu_custom_call.1} parent=1 // pred_check
      _
    $region23: #{tpu_custom_call.1} parent=1 // pred_check_branch
      %57 = sbr.rel (0) target = $region25
    $region24: #{tpu_custom_call.1} parent=1 // pred_region
      %58 = dma.done [#allocation6], 256
    $region25: #{tpu_custom_call.1} parent=1 // pred_fallthru
      _
    %v60 = vld [vmem:[#allocation2] sm:$0xff]
    %v61 = vld [vmem:[#allocation2 + $0x8] sm:$0xff]
    %s62 = scalar_lea.vmem [#allocation2], 16
    %v63 = vld [vmem:[%s62] sm:$0xff]
    %v64 = vld [vmem:[%s62 + $0x8] sm:$0xff]
    %v65 = vlaneseq
    %v66 = vshrl.u32 %v65, 7
    %v67 = vadd.s32 %v66, 8
    %vm68 = vcmp.lt.s32.totalorder %v66, 12
    %vm69 = vcmp.lt.s32.totalorder %v67, 12
    %v70 = vsel %vm68, 1, 0
    %v71 = vsel %vm69, 1, 0
    %v72 = vcvt.s32.f32 %v70
    %v73 = vcvt.s32.f32 %v71
    %v74 = vpack.c.bf16 %v61, %v60
    %v75 = vld [vmem:[#allocation5] sm:$0xf]
    %v76 = vld [vmem:[#allocation5 + $0x4] sm:$0xf]
    %v77 = vld [vmem:[#allocation5 + $0x8] sm:$0xf]
    %v78 = vld [vmem:[#allocation5 + $0xc] sm:$0xf]
    %v79 = vld [vmem:[#allocation5 + $0x10] sm:$0xf]
    %v80 = vld [vmem:[#allocation5 + $0x14] sm:$0xf]
    %v81 = vld [vmem:[#allocation5 + $0x18] sm:$0xf]
    %v82 = vld [vmem:[#allocation5 + $0x1c] sm:$0xf]
    %v83 = vld [vmem:[#allocation5 + $0x20] sm:$0xf]
    %v84 = vld [vmem:[#allocation5 + $0x24] sm:$0xf]
    %v85 = vld [vmem:[#allocation5 + $0x28] sm:$0xf]
    %v86 = vld [vmem:[#allocation5 + $0x2c] sm:$0xf]
    %v87 = vld [vmem:[#allocation5 + $0x30] sm:$0xf]
    %v88 = vld [vmem:[#allocation5 + $0x34] sm:$0xf]
    %v89 = vld [vmem:[#allocation5 + $0x38] sm:$0xf]
    %v90 = vld [vmem:[#allocation5 + $0x3c] sm:$0xf]
    %v91 = vld [vmem:[#allocation7] sm:$0x1]
    %v92 = vlaneseq
    %v93 = vshrl.u32 %v92, 7
    %v94 = vsub.s32 0, %v93
    %v95 = vrot.slane %v91, %v94
    %v112 = vunpack.c.l.b16 %v75
    %v113 = vunpack.c.l.b16 %v76
    %v114 = vunpack.c.l.b16 %v77
    %v115 = vunpack.c.l.b16 %v78
    %v116 = vunpack.c.l.b16 %v79
    %v117 = vunpack.c.l.b16 %v80
    %v118 = vunpack.c.l.b16 %v81
    %v119 = vunpack.c.l.b16 %v82
    %v120 = vunpack.c.l.b16 %v83
    %v121 = vunpack.c.l.b16 %v84
    %v122 = vunpack.c.l.b16 %v85
    %v123 = vunpack.c.l.b16 %v86
    %v124 = vunpack.c.l.b16 %v87
    %v125 = vunpack.c.l.b16 %v88
    %v126 = vunpack.c.l.b16 %v89
    %v127 = vunpack.c.l.b16 %v90
    %v128 = vpack.c.b16 %v113, %v112
    %v129 = vpack.c.b16 %v115, %v114
    %v130 = vpack.c.b16 %v117, %v116
    %v131 = vpack.c.b16 %v119, %v118
    %v132 = vpack.c.b16 %v121, %v120
    %v133 = vpack.c.b16 %v123, %v122
    %v134 = vpack.c.b16 %v125, %v124
    %v135 = vpack.c.b16 %v127, %v126
    %144 = vmatprep.subr.bf16.mxu0 0
    %145 = vmatpush1.bf16.msra.mxu0 %v128
    %146 = vmatprep.subr.bf16.mxu0 0
    %147 = vmatpush1.bf16.msra.mxu0 %v129
    %148 = vmatprep.subr.bf16.mxu0 0
    %149 = vmatpush1.bf16.msra.mxu0 %v130
    %150 = vmatprep.subr.bf16.mxu0 0
    %151 = vmatpush1.bf16.msra.mxu0 %v131
    %152 = vmatprep.subr.bf16.mxu0 0
    %153 = vmatpush1.bf16.msra.mxu0 %v132
    %154 = vmatprep.subr.bf16.mxu0 0
    %155 = vmatpush1.bf16.msra.mxu0 %v133
    %156 = vmatprep.subr.bf16.mxu0 0
    %157 = vmatpush1.bf16.msra.mxu0 %v134
    %158 = vmatprep.subr.bf16.mxu0 0
    %159 = vmatpush1.bf16.msra.mxu0 %v135
    %160 = vmatprep.subr.bf16.mxu0 0
    %161 = vmatpush1.bf16.msra.mxu0 0
    %162 = vmatprep.subr.bf16.mxu0 0
    %163 = vmatpush1.bf16.msra.mxu0 0
    %164 = vmatprep.subr.bf16.mxu0 0
    %165 = vmatpush1.bf16.msra.mxu0 0
    %166 = vmatprep.subr.bf16.mxu0 0
    %167 = vmatpush1.bf16.msra.mxu0 0
    %168 = vmatprep.subr.bf16.mxu0 0
    %169 = vmatpush1.bf16.msra.mxu0 0
    %170 = vmatprep.subr.bf16.mxu0 0
    %171 = vmatpush1.bf16.msra.mxu0 0
    %172 = vmatprep.subr.bf16.mxu0 0
    %173 = vmatpush1.bf16.msra.mxu0 0
    %174 = vmatprep.subr.bf16.mxu0 0
    %175 = vmatpush1.bf16.msra.mxu0 0
    %176 = vmatprep.mubr.bf16.mxu0 0
    %177 = vmatmul.mubr.bf16.gmra.mrb[0].mxu0 %v74
    %v178 = vpop.f32.mrb[0].mxu0
    %v179 = vadd.f32 %v95, %v178
    %v180 = vpop.f32.mrb[0].mxu0
    %v181 = vpop.f32.mrb[0].mxu0
    %v182 = vadd.f32 %v95, %v181
    %v183 = vpop.f32.mrb[0].mxu0
    %184 = vdwg.mxu0
    %v185 = vmax.f32 %v179, 0.0
    %v186 = vmax.f32 %v182, 0.0
    %v187 = vld [vmem:[#allocation7 + $0x1] sm:$0x1]
    %v188 = vld [vmem:[#allocation7 + $0x2] sm:$0x1]
    %v189 = vmul.f32 %v185, %v72
    %v190 = vmul.f32 %v186, %v73
    %v191 = vadd.f32 %v189, %v190
    %v192 = vrot.slane %v191, 4
    %v193 = vadd.f32 %v191, %v192
    %v194 = vrot.slane %v193, 2
    %v195 = vadd.f32 %v193, %v194
    %v196 = vrot.slane %v195, 1
    %v197 = vadd.f32 %v195, %v196
    %v198 = vmul.f32 %v197, 0.083333336
    %v199 = vsub.f32 %v185, %v198
    %v200 = vsub.f32 %v186, %v198
    %v201 = vmul.f32 %v199, %v72
    %v202 = vmul.f32 %v200, %v73
    %v203 = vmul.f32 %v201, %v201
    %v204 = vmul.f32 %v202, %v202
    %v205 = vadd.f32 %v203, %v204
    %v206 = vrot.slane %v205, 4
    %v207 = vadd.f32 %v205, %v206
    %v208 = vrot.slane %v207, 2
    %v209 = vadd.f32 %v207, %v208
    %v210 = vrot.slane %v209, 1
    %v211 = vadd.f32 %v209, %v210
    %v212 = vmul.f32 %v211, 0.083333336
    %v213 = vadd.f32 %v212, 1e-05
    %v214 = vrsqrt.pop %v213
    %v215 = vmul.f32 %v199, %v214
    %v216 = vmul.f32 %v200, %v214
    %v217 = vlaneseq
    %v218 = vshrl.u32 %v217, 7
    %v219 = vsub.s32 0, %v218
    %v220 = vrot.slane %v187, %v219
    %v221 = vmul.f32 %v215, %v220
    %v222 = vmul.f32 %v216, %v220
    %v223 = vlaneseq
    %v224 = vshrl.u32 %v223, 7
    %v225 = vsub.s32 0, %v224
    %v226 = vrot.slane %v188, %v225
    %v227 = vadd.f32 %v221, %v226
    %v228 = vadd.f32 %v222, %v226
    %v229 = vpack.c.bf16 %v228, %v227
    %s230 = scalar_lea.vmem [#allocation5], 64
    %v231 = vld [vmem:[%s230] sm:$0xf]
    %v232 = vld [vmem:[%s230 + $0x4] sm:$0xf]
    %v233 = vld [vmem:[%s230 + $0x8] sm:$0xf]
    %v234 = vld [vmem:[%s230 + $0xc] sm:$0xf]
    %v235 = vld [vmem:[%s230 + $0x10] sm:$0xf]
    %v236 = vld [vmem:[%s230 + $0x14] sm:$0xf]
    %v237 = vld [vmem:[%s230 + $0x18] sm:$0xf]
    %v238 = vld [vmem:[%s230 + $0x1c] sm:$0xf]
    %v239 = vld [vmem:[%s230 + $0x20] sm:$0xf]
    %v240 = vld [vmem:[%s230 + $0x24] sm:$0xf]
    %v241 = vld [vmem:[%s230 + $0x28] sm:$0xf]
    %v242 = vld [vmem:[%s230 + $0x2c] sm:$0xf]
    %v243 = vld [vmem:[%s230 + $0x30] sm:$0xf]
    %v244 = vld [vmem:[%s230 + $0x34] sm:$0xf]
    %v245 = vld [vmem:[%s230 + $0x38] sm:$0xf]
    %v246 = vld [vmem:[%s230 + $0x3c] sm:$0xf]
    %v247 = vld [vmem:[#allocation7 + $0x3] sm:$0x1]
    %v248 = vlaneseq
    %v249 = vshrl.u32 %v248, 7
    %v250 = vsub.s32 0, %v249
    %v251 = vrot.slane %v247, %v250
    %v268 = vunpack.c.l.b16 %v231
    %v269 = vunpack.c.l.b16 %v232
    %v270 = vunpack.c.l.b16 %v233
    %v271 = vunpack.c.l.b16 %v234
    %v272 = vunpack.c.l.b16 %v235
    %v273 = vunpack.c.l.b16 %v236
    %v274 = vunpack.c.l.b16 %v237
    %v275 = vunpack.c.l.b16 %v238
    %v276 = vunpack.c.l.b16 %v239
    %v277 = vunpack.c.l.b16 %v240
    %v278 = vunpack.c.l.b16 %v241
    %v279 = vunpack.c.l.b16 %v242
    %v280 = vunpack.c.l.b16 %v243
    %v281 = vunpack.c.l.b16 %v244
    %v282 = vunpack.c.l.b16 %v245
    %v283 = vunpack.c.l.b16 %v246
    %v284 = vpack.c.b16 %v269, %v268
    %v285 = vpack.c.b16 %v271, %v270
    %v286 = vpack.c.b16 %v273, %v272
    %v287 = vpack.c.b16 %v275, %v274
    %v288 = vpack.c.b16 %v277, %v276
    %v289 = vpack.c.b16 %v279, %v278
    %v290 = vpack.c.b16 %v281, %v280
    %v291 = vpack.c.b16 %v283, %v282
    %300 = vmatprep.subr.bf16.mxu0 0
    %301 = vmatpush1.bf16.msra.mxu0 %v284
    %302 = vmatprep.subr.bf16.mxu0 0
    %303 = vmatpush1.bf16.msra.mxu0 %v285
    %304 = vmatprep.subr.bf16.mxu0 0
    %305 = vmatpush1.bf16.msra.mxu0 %v286
    %306 = vmatprep.subr.bf16.mxu0 0
    %307 = vmatpush1.bf16.msra.mxu0 %v287
    %308 = vmatprep.subr.bf16.mxu0 0
    %309 = vmatpush1.bf16.msra.mxu0 %v288
    %310 = vmatprep.subr.bf16.mxu0 0
    %311 = vmatpush1.bf16.msra.mxu0 %v289
    %312 = vmatprep.subr.bf16.mxu0 0
    %313 = vmatpush1.bf16.msra.mxu0 %v290
    %314 = vmatprep.subr.bf16.mxu0 0
    %315 = vmatpush1.bf16.msra.mxu0 %v291
    %316 = vmatprep.subr.bf16.mxu0 0
    %317 = vmatpush1.bf16.msra.mxu0 0
    %318 = vmatprep.subr.bf16.mxu0 0
    %319 = vmatpush1.bf16.msra.mxu0 0
    %320 = vmatprep.subr.bf16.mxu0 0
    %321 = vmatpush1.bf16.msra.mxu0 0
    %322 = vmatprep.subr.bf16.mxu0 0
    %323 = vmatpush1.bf16.msra.mxu0 0
    %324 = vmatprep.subr.bf16.mxu0 0
    %325 = vmatpush1.bf16.msra.mxu0 0
    %326 = vmatprep.subr.bf16.mxu0 0
    %327 = vmatpush1.bf16.msra.mxu0 0
    %328 = vmatprep.subr.bf16.mxu0 0
    %329 = vmatpush1.bf16.msra.mxu0 0
    %330 = vmatprep.subr.bf16.mxu0 0
    %331 = vmatpush1.bf16.msra.mxu0 0
    %332 = vmatprep.mubr.bf16.mxu0 0
    %333 = vmatmul.mubr.bf16.gmra.mrb[0].mxu0 %v229
    %v334 = vpop.f32.mrb[0].mxu0
    %v335 = vadd.f32 %v251, %v334
    %v336 = vpop.f32.mrb[0].mxu0
    %v337 = vpop.f32.mrb[0].mxu0
    %v338 = vadd.f32 %v251, %v337
    %v339 = vpop.f32.mrb[0].mxu0
    %340 = vdwg.mxu0
    %v341 = vmax.f32 %v335, 0.0
    %v342 = vmax.f32 %v338, 0.0
    %v343 = vld [vmem:[#allocation7 + $0x4] sm:$0x1]
    %v344 = vld [vmem:[#allocation7 + $0x5] sm:$0x1]
    %v345 = vmul.f32 %v341, %v72
    %v346 = vmul.f32 %v342, %v73
    %v347 = vadd.f32 %v345, %v346
    %v348 = vrot.slane %v347, 4
    %v349 = vadd.f32 %v347, %v348
    %v350 = vrot.slane %v349, 2
    %v351 = vadd.f32 %v349, %v350
    %v352 = vrot.slane %v351, 1
    %v353 = vadd.f32 %v351, %v352
    %v354 = vmul.f32 %v353, 0.083333336
    %v355 = vsub.f32 %v341, %v354
    %v356 = vsub.f32 %v342, %v354
    %v357 = vmul.f32 %v355, %v72
    %v358 = vmul.f32 %v356, %v73
    %v359 = vmul.f32 %v357, %v357
    %v360 = vmul.f32 %v358, %v358
    %v361 = vadd.f32 %v359, %v360
    %v362 = vrot.slane %v361, 4
    %v363 = vadd.f32 %v361, %v362
    %v364 = vrot.slane %v363, 2
    %v365 = vadd.f32 %v363, %v364
    %v366 = vrot.slane %v365, 1
    %v367 = vadd.f32 %v365, %v366
    %v368 = vmul.f32 %v367, 0.083333336
    %v369 = vadd.f32 %v368, 1e-05
    %v370 = vrsqrt.pop %v369
    %v371 = vmul.f32 %v355, %v370
    %v372 = vmul.f32 %v356, %v370
    %v373 = vlaneseq
    %v374 = vshrl.u32 %v373, 7
    %v375 = vsub.s32 0, %v374
    %v376 = vrot.slane %v343, %v375
    %v377 = vmul.f32 %v371, %v376
    %v378 = vmul.f32 %v372, %v376
    %v379 = vlaneseq
    %v380 = vshrl.u32 %v379, 7
    %v381 = vsub.s32 0, %v380
    %v382 = vrot.slane %v344, %v381
    %v383 = vadd.f32 %v377, %v382
    %v384 = vadd.f32 %v378, %v382
    %v385 = vpack.c.bf16 %v384, %v383
    %s386 = scalar_lea.vmem [#allocation5], 128
    %v387 = vld [vmem:[%s386] sm:$0xf]
    %v388 = vld [vmem:[%s386 + $0x4] sm:$0xf]
    %v389 = vld [vmem:[%s386 + $0x8] sm:$0xf]
    %v390 = vld [vmem:[%s386 + $0xc] sm:$0xf]
    %v391 = vld [vmem:[%s386 + $0x10] sm:$0xf]
    %v392 = vld [vmem:[%s386 + $0x14] sm:$0xf]
    %v393 = vld [vmem:[%s386 + $0x18] sm:$0xf]
    %v394 = vld [vmem:[%s386 + $0x1c] sm:$0xf]
    %v395 = vld [vmem:[%s386 + $0x20] sm:$0xf]
    %v396 = vld [vmem:[%s386 + $0x24] sm:$0xf]
    %v397 = vld [vmem:[%s386 + $0x28] sm:$0xf]
    %v398 = vld [vmem:[%s386 + $0x2c] sm:$0xf]
    %v399 = vld [vmem:[%s386 + $0x30] sm:$0xf]
    %v400 = vld [vmem:[%s386 + $0x34] sm:$0xf]
    %v401 = vld [vmem:[%s386 + $0x38] sm:$0xf]
    %v402 = vld [vmem:[%s386 + $0x3c] sm:$0xf]
    %v403 = vld [vmem:[#allocation7 + $0x6] sm:$0x1]
    %v404 = vlaneseq
    %v405 = vshrl.u32 %v404, 7
    %v406 = vsub.s32 0, %v405
    %v407 = vrot.slane %v403, %v406
    %v424 = vunpack.c.l.b16 %v387
    %v425 = vunpack.c.l.b16 %v388
    %v426 = vunpack.c.l.b16 %v389
    %v427 = vunpack.c.l.b16 %v390
    %v428 = vunpack.c.l.b16 %v391
    %v429 = vunpack.c.l.b16 %v392
    %v430 = vunpack.c.l.b16 %v393
    %v431 = vunpack.c.l.b16 %v394
    %v432 = vunpack.c.l.b16 %v395
    %v433 = vunpack.c.l.b16 %v396
    %v434 = vunpack.c.l.b16 %v397
    %v435 = vunpack.c.l.b16 %v398
    %v436 = vunpack.c.l.b16 %v399
    %v437 = vunpack.c.l.b16 %v400
    %v438 = vunpack.c.l.b16 %v401
    %v439 = vunpack.c.l.b16 %v402
    %v440 = vpack.c.b16 %v425, %v424
    %v441 = vpack.c.b16 %v427, %v426
    %v442 = vpack.c.b16 %v429, %v428
    %v443 = vpack.c.b16 %v431, %v430
    %v444 = vpack.c.b16 %v433, %v432
    %v445 = vpack.c.b16 %v435, %v434
    %v446 = vpack.c.b16 %v437, %v436
    %v447 = vpack.c.b16 %v439, %v438
    %456 = vmatprep.subr.bf16.mxu0 0
    %457 = vmatpush1.bf16.msra.mxu0 %v440
    %458 = vmatprep.subr.bf16.mxu0 0
    %459 = vmatpush1.bf16.msra.mxu0 %v441
    %460 = vmatprep.subr.bf16.mxu0 0
    %461 = vmatpush1.bf16.msra.mxu0 %v442
    %462 = vmatprep.subr.bf16.mxu0 0
    %463 = vmatpush1.bf16.msra.mxu0 %v443
    %464 = vmatprep.subr.bf16.mxu0 0
    %465 = vmatpush1.bf16.msra.mxu0 %v444
    %466 = vmatprep.subr.bf16.mxu0 0
    %467 = vmatpush1.bf16.msra.mxu0 %v445
    %468 = vmatprep.subr.bf16.mxu0 0
    %469 = vmatpush1.bf16.msra.mxu0 %v446
    %470 = vmatprep.subr.bf16.mxu0 0
    %471 = vmatpush1.bf16.msra.mxu0 %v447
    %472 = vmatprep.subr.bf16.mxu0 0
    %473 = vmatpush1.bf16.msra.mxu0 0
    %474 = vmatprep.subr.bf16.mxu0 0
    %475 = vmatpush1.bf16.msra.mxu0 0
    %476 = vmatprep.subr.bf16.mxu0 0
    %477 = vmatpush1.bf16.msra.mxu0 0
    %478 = vmatprep.subr.bf16.mxu0 0
    %479 = vmatpush1.bf16.msra.mxu0 0
    %480 = vmatprep.subr.bf16.mxu0 0
    %481 = vmatpush1.bf16.msra.mxu0 0
    %482 = vmatprep.subr.bf16.mxu0 0
    %483 = vmatpush1.bf16.msra.mxu0 0
    %484 = vmatprep.subr.bf16.mxu0 0
    %485 = vmatpush1.bf16.msra.mxu0 0
    %486 = vmatprep.subr.bf16.mxu0 0
    %487 = vmatpush1.bf16.msra.mxu0 0
    %488 = vmatprep.mubr.bf16.mxu0 0
    %489 = vmatmul.mubr.bf16.gmra.mrb[0].mxu0 %v385
    %v490 = vpop.f32.mrb[0].mxu0
    %v491 = vadd.f32 %v407, %v490
    %v492 = vpop.f32.mrb[0].mxu0
    %v493 = vpop.f32.mrb[0].mxu0
    %v494 = vadd.f32 %v407, %v493
    %v495 = vpop.f32.mrb[0].mxu0
    %496 = vdwg.mxu0
    %v497 = vmul.f32 %v491, 0.5
    %v498 = vmul.f32 %v494, 0.5
    %v499 = vlaneseq
    %v500 = vand.u32 %v499, 127
    %vm501 = vcmp.lt.s32.totalorder %v500, 8
    %v502 = vsel %vm501, %v497, 0.0
    %v503 = vsel %vm501, %v498, 0.0
    %504 = vrot.lane.b32.xlu0 %v497, 120
    %v505 = vpop.permute.xlu0 %504
    %506 = vrot.lane.b32.xlu0 %v498, 120
    %v507 = vpop.permute.xlu0 %506
    %v508 = vsel %vm501, %v505, 0.0
    %v509 = vsel %vm501, %v507, 0.0
    %v510 = vmul.f32 %v508, 0.5
    %v511 = vmul.f32 %v509, 0.5
    %v512 = vmul.f32 %v510, 1.442695
    %v513 = vpow.pop %v512
    %v514 = vmul.f32 %v511, 1.442695
    %v515 = vpow.pop %v514
    %v516 = vmul.f32 %v63, %v513
    %v517 = vmul.f32 %v64, %v515
    %v518 = vadd.f32 %v502, %v516
    %v519 = vadd.f32 %v503, %v517
    %v520 = vpack.c.bf16 %v519, %v518
    %s521 = scalar_lea.vmem [#allocation5], 192
    %v522 = vld [vmem:[%s521] sm:$0xf]
    %v523 = vld [vmem:[%s521 + $0x4] sm:$0xf]
    %v524 = vld [vmem:[%s521 + $0x8] sm:$0xf]
    %v525 = vld [vmem:[%s521 + $0xc] sm:$0xf]
    %v526 = vld [vmem:[%s521 + $0x10] sm:$0xf]
    %v527 = vld [vmem:[%s521 + $0x14] sm:$0xf]
    %v528 = vld [vmem:[%s521 + $0x18] sm:$0xf]
    %v529 = vld [vmem:[%s521 + $0x1c] sm:$0xf]
    %v530 = vld [vmem:[%s521 + $0x20] sm:$0xf]
    %v531 = vld [vmem:[%s521 + $0x24] sm:$0xf]
    %v532 = vld [vmem:[%s521 + $0x28] sm:$0xf]
    %v533 = vld [vmem:[%s521 + $0x2c] sm:$0xf]
    %v534 = vld [vmem:[%s521 + $0x30] sm:$0xf]
    %v535 = vld [vmem:[%s521 + $0x34] sm:$0xf]
    %v536 = vld [vmem:[%s521 + $0x38] sm:$0xf]
    %v537 = vld [vmem:[%s521 + $0x3c] sm:$0xf]
    %v538 = vld [vmem:[#allocation7 + $0x7] sm:$0x1]
    %v539 = vlaneseq
    %v540 = vshrl.u32 %v539, 7
    %v541 = vsub.s32 0, %v540
    %v542 = vrot.slane %v538, %v541
    %v559 = vunpack.c.l.b16 %v522
    %v560 = vunpack.c.l.b16 %v523
    %v561 = vunpack.c.l.b16 %v524
    %v562 = vunpack.c.l.b16 %v525
    %v563 = vunpack.c.l.b16 %v526
    %v564 = vunpack.c.l.b16 %v527
    %v565 = vunpack.c.l.b16 %v528
    %v566 = vunpack.c.l.b16 %v529
    %v567 = vunpack.c.l.b16 %v530
    %v568 = vunpack.c.l.b16 %v531
    %v569 = vunpack.c.l.b16 %v532
    %v570 = vunpack.c.l.b16 %v533
    %v571 = vunpack.c.l.b16 %v534
    %v572 = vunpack.c.l.b16 %v535
    %v573 = vunpack.c.l.b16 %v536
    %v574 = vunpack.c.l.b16 %v537
    %v575 = vpack.c.b16 %v560, %v559
    %v576 = vpack.c.b16 %v562, %v561
    %v577 = vpack.c.b16 %v564, %v563
    %v578 = vpack.c.b16 %v566, %v565
    %v579 = vpack.c.b16 %v568, %v567
    %v580 = vpack.c.b16 %v570, %v569
    %v581 = vpack.c.b16 %v572, %v571
    %v582 = vpack.c.b16 %v574, %v573
    %591 = vmatprep.subr.bf16.mxu0 0
    %592 = vmatpush1.bf16.msra.mxu0 %v575
    %593 = vmatprep.subr.bf16.mxu0 0
    %594 = vmatpush1.bf16.msra.mxu0 %v576
    %595 = vmatprep.subr.bf16.mxu0 0
    %596 = vmatpush1.bf16.msra.mxu0 %v577
    %597 = vmatprep.subr.bf16.mxu0 0
    %598 = vmatpush1.bf16.msra.mxu0 %v578
    %599 = vmatprep.subr.bf16.mxu0 0
    %600 = vmatpush1.bf16.msra.mxu0 %v579
    %601 = vmatprep.subr.bf16.mxu0 0
    %602 = vmatpush1.bf16.msra.mxu0 %v580
    %603 = vmatprep.subr.bf16.mxu0 0
    %604 = vmatpush1.bf16.msra.mxu0 %v581
    %605 = vmatprep.subr.bf16.mxu0 0
    %606 = vmatpush1.bf16.msra.mxu0 %v582
    %607 = vmatprep.subr.bf16.mxu0 0
    %608 = vmatpush1.bf16.msra.mxu0 0
    %609 = vmatprep.subr.bf16.mxu0 0
    %610 = vmatpush1.bf16.msra.mxu0 0
    %611 = vmatprep.subr.bf16.mxu0 0
    %612 = vmatpush1.bf16.msra.mxu0 0
    %613 = vmatprep.subr.bf16.mxu0 0
    %614 = vmatpush1.bf16.msra.mxu0 0
    %615 = vmatprep.subr.bf16.mxu0 0
    %616 = vmatpush1.bf16.msra.mxu0 0
    %617 = vmatprep.subr.bf16.mxu0 0
    %618 = vmatpush1.bf16.msra.mxu0 0
    %619 = vmatprep.subr.bf16.mxu0 0
    %620 = vmatpush1.bf16.msra.mxu0 0
    %621 = vmatprep.subr.bf16.mxu0 0
    %622 = vmatpush1.bf16.msra.mxu0 0
    %623 = vmatprep.mubr.bf16.mxu0 0
    %624 = vmatmul.mubr.bf16.gmra.mrb[0].mxu0 %v520
    %v625 = vpop.f32.mrb[0].mxu0
    %v626 = vadd.f32 %v542, %v625
    %v627 = vpop.f32.mrb[0].mxu0
    %v628 = vpop.f32.mrb[0].mxu0
    %v629 = vadd.f32 %v542, %v628
    %v630 = vpop.f32.mrb[0].mxu0
    %631 = vdwg.mxu0
    %v632 = vmax.f32 %v626, 0.0
    %v633 = vmax.f32 %v629, 0.0
    %v634 = vpack.c.bf16 %v633, %v632
    %s635 = scalar_lea.vmem [#allocation5], 256
    %v636 = vld [vmem:[%s635] sm:$0xf]
    %v637 = vld [vmem:[%s635 + $0x4] sm:$0xf]
    %v638 = vld [vmem:[%s635 + $0x8] sm:$0xf]
    %v639 = vld [vmem:[%s635 + $0xc] sm:$0xf]
    %v640 = vld [vmem:[%s635 + $0x10] sm:$0xf]
    %v641 = vld [vmem:[%s635 + $0x14] sm:$0xf]
    %v642 = vld [vmem:[%s635 + $0x18] sm:$0xf]
    %v643 = vld [vmem:[%s635 + $0x1c] sm:$0xf]
    %v644 = vld [vmem:[%s635 + $0x20] sm:$0xf]
    %v645 = vld [vmem:[%s635 + $0x24] sm:$0xf]
    %v646 = vld [vmem:[%s635 + $0x28] sm:$0xf]
    %v647 = vld [vmem:[%s635 + $0x2c] sm:$0xf]
    %v648 = vld [vmem:[%s635 + $0x30] sm:$0xf]
    %v649 = vld [vmem:[%s635 + $0x34] sm:$0xf]
    %v650 = vld [vmem:[%s635 + $0x38] sm:$0xf]
    %v651 = vld [vmem:[%s635 + $0x3c] sm:$0xf]
    %v652 = vld [vmem:[#allocation7 + $0x8] sm:$0x1]
    %v653 = vlaneseq
    %v654 = vshrl.u32 %v653, 7
    %v655 = vsub.s32 0, %v654
    %v656 = vrot.slane %v652, %v655
    %v673 = vunpack.c.l.b16 %v636
    %v674 = vunpack.c.l.b16 %v637
    %v675 = vunpack.c.l.b16 %v638
    %v676 = vunpack.c.l.b16 %v639
    %v677 = vunpack.c.l.b16 %v640
    %v678 = vunpack.c.l.b16 %v641
    %v679 = vunpack.c.l.b16 %v642
    %v680 = vunpack.c.l.b16 %v643
    %v681 = vunpack.c.l.b16 %v644
    %v682 = vunpack.c.l.b16 %v645
    %v683 = vunpack.c.l.b16 %v646
    %v684 = vunpack.c.l.b16 %v647
    %v685 = vunpack.c.l.b16 %v648
    %v686 = vunpack.c.l.b16 %v649
    %v687 = vunpack.c.l.b16 %v650
    %v688 = vunpack.c.l.b16 %v651
    %v689 = vpack.c.b16 %v674, %v673
    %v690 = vpack.c.b16 %v676, %v675
    %v691 = vpack.c.b16 %v678, %v677
    %v692 = vpack.c.b16 %v680, %v679
    %v693 = vpack.c.b16 %v682, %v681
    %v694 = vpack.c.b16 %v684, %v683
    %v695 = vpack.c.b16 %v686, %v685
    %v696 = vpack.c.b16 %v688, %v687
    %705 = vmatprep.subr.bf16.mxu0 0
    %706 = vmatpush1.bf16.msra.mxu0 %v689
    %707 = vmatprep.subr.bf16.mxu0 0
    %708 = vmatpush1.bf16.msra.mxu0 %v690
    %709 = vmatprep.subr.bf16.mxu0 0
    %710 = vmatpush1.bf16.msra.mxu0 %v691
    %711 = vmatprep.subr.bf16.mxu0 0
    %712 = vmatpush1.bf16.msra.mxu0 %v692
    %713 = vmatprep.subr.bf16.mxu0 0
    %714 = vmatpush1.bf16.msra.mxu0 %v693
    %715 = vmatprep.subr.bf16.mxu0 0
    %716 = vmatpush1.bf16.msra.mxu0 %v694
    %717 = vmatprep.subr.bf16.mxu0 0
    %718 = vmatpush1.bf16.msra.mxu0 %v695
    %719 = vmatprep.subr.bf16.mxu0 0
    %720 = vmatpush1.bf16.msra.mxu0 %v696
    %721 = vmatprep.subr.bf16.mxu0 0
    %722 = vmatpush1.bf16.msra.mxu0 0
    %723 = vmatprep.subr.bf16.mxu0 0
    %724 = vmatpush1.bf16.msra.mxu0 0
    %725 = vmatprep.subr.bf16.mxu0 0
    %726 = vmatpush1.bf16.msra.mxu0 0
    %727 = vmatprep.subr.bf16.mxu0 0
    %728 = vmatpush1.bf16.msra.mxu0 0
    %729 = vmatprep.subr.bf16.mxu0 0
    %730 = vmatpush1.bf16.msra.mxu0 0
    %731 = vmatprep.subr.bf16.mxu0 0
    %732 = vmatpush1.bf16.msra.mxu0 0
    %733 = vmatprep.subr.bf16.mxu0 0
    %734 = vmatpush1.bf16.msra.mxu0 0
    %735 = vmatprep.subr.bf16.mxu0 0
    %736 = vmatpush1.bf16.msra.mxu0 0
    %737 = vmatprep.mubr.bf16.mxu0 0
    %738 = vmatmul.mubr.bf16.gmra.mrb[0].mxu0 %v634
    %v739 = vpop.f32.mrb[0].mxu0
    %v740 = vadd.f32 %v656, %v739
    %v741 = vpop.f32.mrb[0].mxu0
    %v742 = vpop.f32.mrb[0].mxu0
    %v743 = vadd.f32 %v656, %v742
    %v744 = vpop.f32.mrb[0].mxu0
    %745 = vdwg.mxu0
    %746 = vrot.lane.b32.xlu0 %v740, 8
    %v747 = vpop.permute.xlu0 %746
    %748 = vrot.lane.b32.xlu0 %v743, 8
    %v749 = vpop.permute.xlu0 %748
    %v750 = vadd.f32 %v518, %v747
    %v751 = vadd.f32 %v519, %v749
    %752 = vst [vmem:[#allocation8] sm:$0xff] %v750
    %753 = vst [vmem:[#allocation8 + $0x8] sm:$0xff] %v751
    %v754 = vadd.f32 %v508, 1.0
    %v755 = vadd.f32 %v509, 1.0
    %v756 = vmul.f32 %v502, %v502
    %v757 = vmul.f32 %v503, %v503
    %v758 = vsub.f32 %v754, %v756
    %v759 = vsub.f32 %v755, %v757
    %v760 = vmul.f32 %v508, 1.442695
    %v761 = vpow.pop %v760
    %v762 = vmul.f32 %v509, 1.442695
    %v763 = vpow.pop %v762
    %v764 = vsub.f32 %v758, %v761
    %v765 = vsub.f32 %v759, %v763
    %v766 = vmul.f32 %v764, %v72
    %v767 = vmul.f32 %v765, %v73
    %v768 = vadd.f32 %v766, %v767
    %v769 = vrot.slane %v768, 4
    %v770 = vadd.f32 %v768, %v769
    %v771 = vrot.slane %v770, 2
    %v772 = vadd.f32 %v770, %v771
    %v773 = vrot.slane %v772, 1
    %v774 = vadd.f32 %v772, %v773
    %v775 = vsub.f32 %v740, %v60
    %v776 = vsub.f32 %v743, %v61
    %v777 = vmul.f32 %v775, %v775
    %v778 = vmul.f32 %v776, %v776
    %v779 = vmul.f32 %v777, %v72
    %v780 = vmul.f32 %v778, %v73
    %v781 = vadd.f32 %v779, %v780
    %v782 = vrot.slane %v781, 4
    %v783 = vadd.f32 %v781, %v782
    %v784 = vrot.slane %v783, 2
    %v785 = vadd.f32 %v783, %v784
    %v786 = vrot.slane %v785, 1
    %v787 = vadd.f32 %v785, %v786
    %788 = vadd.xlane.f32.xlu0 %v774
    %v789 = vpop.xlane.xlu0 %788
    %v790 = vmul.f32 %v789, -0.5
    %vm791 = vcmp.lt.s32.totalorder %v500, 32
    %v792 = vsel %vm791, %v787, 0.0
    %793 = vadd.xlane.f32.xlu0 %v792
    %v794 = vpop.xlane.xlu0 %793
    %795 = vadd.xlane.f32.xlu0 %v787
    %v796 = vpop.xlane.xlu0 %795
    %v797 = vmul.f32 %v794, 0.0026041667
    %v798 = vsub.f32 %v796, %v794
    %v799 = vmul.f32 %v798, 0.0052083335
    %v800 = vadd.f32 %v797, %v799
    %v801 = vadd.f32 %v800, %v790
    %vm802 = vcmp.eq.s32.totalorder %v500, 0
    %v803 = vsel %vm802, %v790, 0.0
    %vm804 = vcmp.eq.s32.totalorder %v500, 1
    %v805 = vsel %vm804, %v800, 0.0
    %v806 = vadd.f32 %v803, %v805
    %vm807 = vcmp.eq.s32.totalorder %v500, 2
    %v808 = vsel %vm807, %v801, 0.0
    %v809 = vadd.f32 %v806, %v808
    %810 = vst [vmem:[#allocation9] sm:$0x1] %v809
    // Predicated region
    $region26: #{tpu_custom_call.1} parent=1 // pred_check
      _
    $region27: #{tpu_custom_call.1} parent=1 // pred_check_branch
      %812 = sbr.rel (0) target = $region29
    $region28: #{tpu_custom_call.1} parent=1 // pred_region
      %s814 = ssub.s32 256, 256
      %815 = vsyncadd [#allocation4], %s814
      %s816 = sshll.u32 [#allocation8], 4
      %s817 = int_to_ptr.vmem [resolvable:$true] %s816
      %822 = dma.vmem_to_hbm [thread:$0]  %s817, 256, %s3, [#allocation4], 128, 128, 8
    $region29: #{tpu_custom_call.1} parent=1 // pred_fallthru
      _
    // Predicated region
    $region30: #{tpu_custom_call.1} parent=1 // pred_check
      _
    $region31: #{tpu_custom_call.1} parent=1 // pred_check_branch
      %824 = sbr.rel (0) target = $region33
    $region32: #{tpu_custom_call.1} parent=1 // pred_region
      %s826 = ssub.s32 16, 16
      %827 = vsyncadd [#allocation10], %s826
      %s829 = sshll.u32 [#allocation9], 4
      %s830 = int_to_ptr.vmem [resolvable:$true] %s829
      %832 = dma.vmem_to_hbm [thread:$0]  %s830, 16, %s4, [#allocation10]
    $region33: #{tpu_custom_call.1} parent=1 // pred_fallthru
      _
    // Predicated region
    $region34: #{tpu_custom_call.1} parent=1 // pred_check
      _
    $region35: #{tpu_custom_call.1} parent=1 // pred_check_branch
      %834 = sbr.rel (0) target = $region37
    $region36: #{tpu_custom_call.1} parent=1 // pred_region
      %835 = dma.done [#allocation4], 256
    $region37: #{tpu_custom_call.1} parent=1 // pred_fallthru
      _
    // Predicated region
    $region38: #{tpu_custom_call.1} parent=1 // pred_check
      _
    $region39: #{tpu_custom_call.1} parent=1 // pred_check_branch
      %837 = sbr.rel (0) target = $region41
    $region40: #{tpu_custom_call.1} parent=1 // pred_region
      %838 = dma.done [#allocation10], 16
    $region41: #{tpu_custom_call.1} parent=1 // pred_fallthru
      _
    %839 = vsyncpa [#allocation3], 1
    %840 = vsyncpa [#allocation6], 1
    %841 = vsyncpa [#allocation4], 1
    %842 = vsyncpa [#allocation10], 1

</llo_original>
